<compile_context>
chip_gen: v7x
topology: tpu7x:2x2x1
jax: 0.10.0
libtpu: 0.0.40
codegen_flags: <defaults>
</compile_context>

<pallas_src>
import math

import jax
import jax.numpy as jnp
from jax.experimental import pallas as pl
from jax.experimental.pallas import tpu as pltpu

_HALF_LOG_2PI = 0.5 * math.log(2.0 * math.pi)


# ---------------------------------------------------------------------------
# Hardware queries (guarded -- fall back to safe defaults if unavailable).
# ---------------------------------------------------------------------------
def _tpu_info():
    try:
        return pltpu.get_tpu_info()
    except Exception:
        return None


def _num_tensorcores():
    info = _tpu_info()
    if info is not None:
        for name in ("num_cores", "num_tensorcores", "tensorcore_count",
                     "cores_per_chip"):
            v = getattr(info, name, None)
            if isinstance(v, int) and v > 0:
                return v
    return 1


def _vmem_capacity_bytes():
    info = _tpu_info()
    if info is not None:
        v = getattr(info, "vmem_capacity_bytes", None)
        if isinstance(v, int) and v > 0:
            return v
    return 128 << 20


# ---------------------------------------------------------------------------
# Kernel
# ---------------------------------------------------------------------------
def _make_kernel(tile_b, D, nb):
    """Streaming Horner-form log-prob partial sum over a chunk of `nb` tiles."""
    groups = tile_b // 8

    def kernel(z_ref, ab_ref, out_ref, acc_ref):
        i = pl.program_id(1)  # reduction step within this chunk

        @pl.when(i == 0)
        def _init():
            acc_ref[...] = jnp.zeros_like(acc_ref)

        log_z = jnp.log(z_ref[...].astype(jnp.float32))    # (tile_b, D)
        a = ab_ref[0:1, :]                                  # (1, D) broadcast rows
        b = ab_ref[1:2, :]                                  # (1, D)
        lp = (a * log_z + b) * log_z                        # Horner form, no constant

        # Fold tile_b rows into one sublane group with pure per-vreg VPU adds;
        # only a single (8, D) accumulator load+store per grid step.
        acc_ref[...] += lp.reshape(groups, 8, D).sum(axis=0)

        @pl.when(i == nb - 1)
        def _finalize():
            # One cross-lane reduce per chunk, written to this chunk's SMEM slot.
            out_ref[0, 0] = jnp.sum(acc_ref[...])

    return kernel


# ---------------------------------------------------------------------------
# Wrapper
# ---------------------------------------------------------------------------
def variational_family_nmf_forward(z, mu_var, log_sigma_var, *, max_tile_b=8192):
    """Equivalent of VariationalFamilyNMF.forward(z) -> scalar log-prob sum."""
    B, D = z.shape
    itemsize = jnp.dtype(z.dtype).itemsize

    # ---- Hoisted per-column parameter math (Horner coefficients + constant).
    ls = log_sigma_var.astype(jnp.float32).reshape(1, D)
    mu = mu_var.astype(jnp.float32).reshape(1, D)
    a = -0.5 * jnp.exp(-2.0 * ls)                  # -1 / (2*sigma^2)
    b = -(2.0 * a * mu + 1.0)                      # folds the -log_z term as well
    ab = jnp.concatenate([a, b], axis=0)           # (2, D) packed constant input
    # Constant term scaled by the TRUE batch size (kernel/tail never include it).
    const_total = B * jnp.sum(a * mu * mu - ls - _HALF_LOG_2PI)

    # ---- Hardware-aware tile sizing (re-derived per generation via VMEM capacity).
    vmem_cap = _vmem_capacity_bytes()              # 128 MiB v5e/v6e, 64 MiB v7x
    tile_budget = vmem_cap // 4                    # for the double-buffered z tiles
    rows_by_budget = max(8, (tile_budget // (2 * D * itemsize)) // 8 * 8)
    b_floor8 = (B // 8) * 8                        # largest full-sublane row count <= B
    tile_b = int(min(max_tile_b, rows_by_budget, max(b_floor8, 8)))
    tile_b = max(8, (tile_b // 8) * 8)

    nb_total = B // tile_b if tile_b <= B else 0   # full tiles streamed by the kernel
    B_full = nb_total * tile_b

    bulk_sum = jnp.float32(0.0)
    if nb_total > 0:
        # "parallel" chunk axis only when it splits real tiles evenly (v7x megacore);
        # single-TC v5e/v6e get nc=1 (no padded reads, no extra init/finalize).
        nc_hw = _num_tensorcores()
        nc = nc_hw if (nc_hw > 1 and nb_total % nc_hw == 0) else 1
        nb = nb_total // nc

        # Explicit VMEM limit with headroom (>= scoped defaults, <= ~half physical).
        zdbl = 2 * tile_b * D * itemsize           # double-buffered z tile
        misc = 6 * 8 * D * 4 + (1 << 20)           # ab (dbl-buf), (8,D) acc, slack
        vmem_limit = int(min(max(2 * (zdbl + misc), 32 << 20),
                             max(vmem_cap // 2, zdbl + misc)))

        kernel = _make_kernel(tile_b, D, nb)
        partials = pl.pallas_call(
            kernel,
            out_shape=jax.ShapeDtypeStruct((nc, 1), jnp.float32),
            grid=(nc, nb),
            in_specs=[
                # Stream the aligned bulk directly from z (no padding copy); only
                # full, in-bounds blocks are ever indexed.
                pl.BlockSpec((tile_b, D), lambda c, i, _nb=nb: (c * _nb + i, 0)),
                pl.BlockSpec((2, D), lambda c, i: (0, 0)),
            ],
            out_specs=pl.BlockSpec((1, 1), lambda c, i: (c, 0),
                                   memory_space=pltpu.SMEM),
            scratch_shapes=[pltpu.VMEM((8, D), jnp.float32)],
            compiler_params=pltpu.CompilerParams(
                dimension_semantics=("parallel", "arbitrary"),
                vmem_limit_bytes=vmem_limit),
        )(z, ab)
        bulk_sum = jnp.sum(partials)

    # ---- Ragged tail (< tile_b rows): same Horner form, plain JAX, no big copy.
    tail_sum = jnp.float32(0.0)
    if B_full < B:
        lz_tail = jnp.log(z[B_full:].astype(jnp.float32))
        tail_sum = jnp.sum((a * lz_tail + b) * lz_tail)

    return bulk_sum + tail_sum + const_total


def _reference_forward(z, mu_var, log_sigma_var):
    """Pure-JAX reference mirroring torch LogNormal.log_prob(z).sum()."""
    sigma = jnp.exp(log_sigma_var)
    log_z = jnp.log(z.astype(jnp.float32))
    lp = (-((log_z - mu_var) ** 2) / (2.0 * sigma * sigma)
          - log_sigma_var
          - _HALF_LOG_2PI
          - log_z)
    return jnp.sum(lp)


if __name__ == "__main__":
    base_key = jax.random.PRNGKey(0)

    def run_case(batch, latent_dim, max_tile_b, key):
        k_z, k_mu, k_ls = jax.random.split(key, 3)
        mu_var = 0.1 * jax.random.normal(k_mu, (latent_dim,), dtype=jnp.float32)
        log_sigma_var = 0.1 * jax.random.normal(k_ls, (latent_dim,), dtype=jnp.float32)
        # z must be positive (LogNormal support), matching distr.rsample output.
        z = jnp.exp(0.5 * jax.random.normal(k_z, (batch, latent_dim),
                                            dtype=jnp.float32))
        out = variational_family_nmf_forward(z, mu_var, log_sigma_var,
                                             max_tile_b=max_tile_b)
        out = jax.block_until_ready(out)
        ref = _reference_forward(z, mu_var, log_sigma_var)
        assert jnp.allclose(out, ref, rtol=2e-4, atol=1e-2), (batch, out, ref)
        return out

    # Primary small case (module-consistent shapes); fully covered by the kernel.
    run_case(batch=16, latent_dim=128, max_tile_b=8192, key=base_key)
    # Non-divisible batch -> exercises bulk kernel + plain-JAX ragged tail (no pad copy).
    run_case(batch=37, latent_dim=128, max_tile_b=8192,
             key=jax.random.fold_in(base_key, 1))
    # Multi-step streaming reduction (+ chunk split when >1 TC) + ragged tail.
    run_case(batch=600, latent_dim=128, max_tile_b=128,
             key=jax.random.fold_in(base_key, 2))

    print("KERNEL_OK")
</pallas_src>

<mosaic_0001>
module attributes {stable_mosaic.version = 11 : i64} {
  func.func @kernel(%arg0: i32, %arg1: i32, %arg2: memref<16x128xf32, #tpu.memory_space<vmem>>, %arg3: memref<2x128xf32, #tpu.memory_space<vmem>>, %arg4: memref<1x1xf32, #tpu.memory_space<smem>>, %arg5: memref<8x128xf32, #tpu.memory_space<vmem>>) attributes {dimension_semantics = [#tpu.dimension_semantics<parallel>, #tpu.dimension_semantics<arbitrary>], iteration_bounds = array<i64: 1, 1>, scalar_prefetch = 0 : i64, scratch_operands = 1 : i64, tpu.core_type = #tpu.core_type<tc>, window_params = [{transform_indices = @transform_0, window_bounds = array<i64: 16, 128>}, {pipeline_mode = #tpu.pipeline_mode<synchronous>, transform_indices = @transform_1, window_bounds = array<i64: 2, 128>}, {transform_indices = @transform_2, window_bounds = array<i64: 1, 1>}]} {
    %c0_i32 = arith.constant 0 : i32
    %0 = arith.cmpi eq, %arg1, %c0_i32 : i32
    %1 = arith.extui %0 : i1 to i32
    %c0_i32_0 = arith.constant 0 : i32
    %2 = arith.cmpi ne, %1, %c0_i32_0 : i32
    scf.if %2 {
      %cst_11 = arith.constant 0.000000e+00 : f32
      %20 = vector.broadcast %cst_11 : f32 to vector<8x128xf32>
      %c0_12 = arith.constant 0 : index
      %c0_13 = arith.constant 0 : index
      %21 = vector.load %arg5[%c0_12, %c0_13] : memref<8x128xf32, #tpu.memory_space<vmem>>, vector<8x128xf32>
      tpu.vector_store %arg5[%c0_12, %c0_13], %20 {strides = array<i32>} : memref<8x128xf32, #tpu.memory_space<vmem>>, vector<8x128xf32>,
    } else {
    }
    %c0 = arith.constant 0 : index
    %c0_1 = arith.constant 0 : index
    %3 = vector.load %arg2[%c0, %c0_1] : memref<16x128xf32, #tpu.memory_space<vmem>>, vector<16x128xf32>
    %4 = math.log %3 : vector<16x128xf32>
    %c0_2 = arith.constant 0 : index
    %c0_3 = arith.constant 0 : index
    %5 = vector.load %arg3[%c0_2, %c0_3] : memref<2x128xf32, #tpu.memory_space<vmem>>, vector<1x128xf32>
    %c1 = arith.constant 1 : index
    %c0_4 = arith.constant 0 : index
    %6 = vector.load %arg3[%c1, %c0_4] : memref<2x128xf32, #tpu.memory_space<vmem>>, vector<1x128xf32>
    %7 = vector.broadcast %5 : vector<1x128xf32> to vector<16x128xf32>
    %8 = arith.mulf %7, %4 : vector<16x128xf32>
    %9 = vector.broadcast %6 : vector<1x128xf32> to vector<16x128xf32>
    %10 = arith.addf %8, %9 : vector<16x128xf32>
    %11 = arith.mulf %10, %4 : vector<16x128xf32>
    %c0_5 = arith.constant 0 : index
    %c0_6 = arith.constant 0 : index
    %12 = vector.load %arg5[%c0_5, %c0_6] : memref<8x128xf32, #tpu.memory_space<vmem>>, vector<8x128xf32>
    %13 = vector.shape_cast %11 : vector<16x128xf32> to vector<2x8x128xf32>
    %cst = arith.constant dense<0.000000e+00> : vector<8x128xf32>
    %14 = vector.multi_reduction <add>, %13, %cst [0] : vector<2x8x128xf32> to vector<8x128xf32>
    %15 = arith.addf %12, %14 : vector<8x128xf32>
    %c0_7 = arith.constant 0 : index
    %c0_8 = arith.constant 0 : index
    %16 = vector.load %arg5[%c0_7, %c0_8] : memref<8x128xf32, #tpu.memory_space<vmem>>, vector<8x128xf32>
    tpu.vector_store %arg5[%c0_7, %c0_8], %15 {strides = array<i32>} : memref<8x128xf32, #tpu.memory_space<vmem>>, vector<8x128xf32>,
    %c0_i32_9 = arith.constant 0 : i32
    %17 = arith.cmpi eq, %arg1, %c0_i32_9 : i32
    %18 = arith.extui %17 : i1 to i32
    %c0_i32_10 = arith.constant 0 : i32
    %19 = arith.cmpi ne, %18, %c0_i32_10 : i32
    scf.if %19 {
      %c0_11 = arith.constant 0 : index
      %c0_12 = arith.constant 0 : index
      %20 = vector.load %arg5[%c0_11, %c0_12] : memref<8x128xf32, #tpu.memory_space<vmem>>, vector<8x128xf32>
      %21 = vector.shape_cast %20 : vector<8x128xf32> to vector<1x8x128xf32>
      %cst_13 = arith.constant dense<0.000000e+00> : vector<1xf32>
      %22 = vector.multi_reduction <add>, %21, %cst_13 [1, 2] : vector<1x8x128xf32> to vector<1xf32>
      %23 = vector.shape_cast %22 : vector<1xf32> to vector<1x1x1xf32>
      %24 = vector.extract %23[0, 0, 0] : f32 from vector<1x1x1xf32>
      %c0_14 = arith.constant 0 : index
      %c0_15 = arith.constant 0 : index
      %25 = memref.load %arg4[%c0_14, %c0_15] : memref<1x1xf32, #tpu.memory_space<smem>>
      memref.store %24, %arg4[%c0_14, %c0_15] : memref<1x1xf32, #tpu.memory_space<smem>>
    } else {
    }
    return
  }
  func.func @transform_0(%arg0: i32, %arg1: i32) -> (i32, i32) {
    %c1_i32 = arith.constant 1 : i32
    %0 = arith.muli %arg0, %c1_i32 : i32
    %1 = arith.addi %0, %arg1 : i32
    %c0_i32 = arith.constant 0 : i32
    %c0_i32_0 = arith.constant 0 : i32
    return %1, %c0_i32 : i32, i32
  }
  func.func @transform_1(%arg0: i32, %arg1: i32) -> (i32, i32) {
    %c0_i32 = arith.constant 0 : i32
    %c0_i32_0 = arith.constant 0 : i32
    %c0_i32_1 = arith.constant 0 : i32
    return %c0_i32, %c0_i32_0 : i32, i32
  }
  func.func @transform_2(%arg0: i32, %arg1: i32) -> (i32, i32) {
    %c0_i32 = arith.constant 0 : i32
    %c0_i32_0 = arith.constant 0 : i32
    return %arg0, %c0_i32 : i32, i32
  }
}

</mosaic_0001>

<llo_original>
// kernel: tpu_custom_call.1
$region0: #{tpu_custom_call.1}
  #allocation0 [shape = 'u32[]', space=smem, size = 0x4, offset = 0x4, fixed_abs, tag = 'smem constant byte address 0x4 - core index']
  #allocation1 [shape = 'u32[144,128]{1,0:T(1,128)}', space=vmem, size = 0x12000, scoped, tag = 'internal scratch']
  #allocation2 [shape = 'f32[8,128]{1,0:T(8,128)}', space=vmem, size = 0x1000, scoped, tag = 'scratch operand']
  %s0 = inlined_call_operand.hbm [shape: f32[16,128], index: 0, kind: input, shape index: {}]
  %s1 = inlined_call_operand.vmem [shape: f32[2,128], index: 1, kind: input, shape index: {}]
  %s2 = inlined_call_operand.hbm [shape: f32[1,1], index: 2, kind: output, shape index: {}]
  %s3 = sld [smem:[#allocation0]]
  $region30: #{tpu_custom_call.1} parent=0
    _
  %s5 = ssub.s32 1, %s3
  %s6 = scalar_select 0, %s5, %s3
  $region1: #{tpu_custom_call.1} parent=0
    #allocation3 [shape = 'u8[8192]{0}', space=vmem, size = 0x2000, scoped, tag = 'input window, operand 0, single buffered']
    #allocation4 [shape = 's32[1]{0}', space=sflag, size = 0x4, scoped, tag = 'scoped memory for tpu_custom_call.1']
    #allocation5 [shape = 's32[1]{0}', space=sflag, size = 0x4, scoped, tag = 'scoped memory for tpu_custom_call.1']
    #allocation6 [shape = 'u8[512]{0}', space=smem, size = 0x200, scoped, tag = 'output window, operand 0, single buffered']
    %7 = vsyncpa [#allocation4], 0
    %8 = vsyncpa [#allocation5], 0
    // Predicated region
    $region2: #{tpu_custom_call.1} parent=1 // pred_check
      _
    $region3: #{tpu_custom_call.1} parent=1 // pred_check_branch
      %10 = sbr.rel (0) target = $region5
    $region4: #{tpu_custom_call.1} parent=1 // pred_region
      %s11 = sadd.s32 0, 0
      %s12 = smul.u32 2, %s11
      %s14 = ssub.s32 256, 256
      %15 = vsyncadd [#allocation4], %s14
      %s16 = smul.addr %s12, 128
      %s17 = scalar_lea.hbm %s0, %s16
      %s18 = sshll.u32 [#allocation3], 4
      %s19 = int_to_ptr.vmem [resolvable:$true] %s18
      %24 = dma.hbm_to_vmem [thread:$0]  %s17, 256, %s19, [#allocation4], 128, 128, 8
    $region5: #{tpu_custom_call.1} parent=1 // pred_fallthru
      _
    // Predicated region
    $region6: #{tpu_custom_call.1} parent=1 // pred_check
      _
    $region7: #{tpu_custom_call.1} parent=1 // pred_check_branch
      %26 = sbr.rel (0) target = $region9
    $region8: #{tpu_custom_call.1} parent=1 // pred_region
      _
    $region9: #{tpu_custom_call.1} parent=1 // pred_fallthru
      _
    // Predicated region
    $region10: #{tpu_custom_call.1} parent=1 // pred_check
      _
    $region11: #{tpu_custom_call.1} parent=1 // pred_check_branch
      %28 = sbr.rel (0) target = $region13
    $region12: #{tpu_custom_call.1} parent=1 // pred_region
      %29 = dma.done [#allocation4], 256
    $region13: #{tpu_custom_call.1} parent=1 // pred_fallthru
      _
    %s30 = sadd.s32 0, 0
    %s31 = smul.u32 2, %s30
    %p32 = scmp.eq.s32.totalorder 0, 0
    // Predicated region
    $region14: #{tpu_custom_call.1} parent=1 // pred_check
      %p33 = pneg %p32
    $region15: #{tpu_custom_call.1} parent=1 // pred_check_branch
      %35 = sbr.rel (%p33) target = $region17
    $region16: #{tpu_custom_call.1} parent=1 // pred_region
      %36 = vst [vmem:[#allocation2] sm:$0xff] 0.0
    $region17: #{tpu_custom_call.1} parent=1 // pred_fallthru
      _
    %v37 = vld [vmem:[#allocation3] sm:$0xff]
    %v38 = vld [vmem:[#allocation3 + $0x8] sm:$0xff]
    %v39 = vlog2.pop %v37
    %v40 = vmul.f32 %v39, 0.6931472
    %v41 = vlog2.pop %v38
    %v42 = vmul.f32 %v41, 0.6931472
    %v43 = vld [vmem:[%s1] sm:$0x1]
    %v44 = vld [vmem:[%s1 + $0x1] sm:$0x1]
    %v45 = vlaneseq
    %v46 = vshrl.u32 %v45, 7
    %v47 = vsub.s32 0, %v46
    %v48 = vrot.slane %v43, %v47
    %v49 = vmul.f32 %v48, %v40
    %v50 = vmul.f32 %v48, %v42
    %v51 = vlaneseq
    %v52 = vshrl.u32 %v51, 7
    %v53 = vsub.s32 0, %v52
    %v54 = vrot.slane %v44, %v53
    %v55 = vadd.f32 %v49, %v54
    %v56 = vadd.f32 %v50, %v54
    %v57 = vmul.f32 %v55, %v40
    %v58 = vmul.f32 %v56, %v42
    %v59 = vld [vmem:[#allocation2] sm:$0xff]
    %v60 = vadd.f32 %v57, %v58
    %v61 = vadd.f32 %v59, %v60
    %62 = vst [vmem:[#allocation2] sm:$0xff] %v61
    // Predicated region
    $region18: #{tpu_custom_call.1} parent=1 // pred_check
      %p63 = pneg %p32
    $region19: #{tpu_custom_call.1} parent=1 // pred_check_branch
      %65 = sbr.rel (%p63) target = $region21
    $region20: #{tpu_custom_call.1} parent=1 // pred_region
      %v66 = vld [vmem:[#allocation2] sm:$0xff]
      %67 = vadd.xlane.f32.xlu0 %v66
      %v68 = vpop.xlane.xlu0 %67
      %v69 = vrot.slane %v68, 4
      %v70 = vadd.f32 %v68, %v69
      %v71 = vrot.slane %v70, 2
      %v72 = vadd.f32 %v70, %v71
      %v73 = vrot.slane %v72, 1
      %v74 = vadd.f32 %v72, %v73
      %s75 = vtos %v74
      %s76 = scalar_lea.smem [#allocation6], 0
      %77 = sst [smem:[%s76]] %s75
    $region21: #{tpu_custom_call.1} parent=1 // pred_fallthru
      _
    // Predicated region
    $region22: #{tpu_custom_call.1} parent=1 // pred_check
      _
    $region23: #{tpu_custom_call.1} parent=1 // pred_check_branch
      %79 = sbr.rel (0) target = $region25
    $region24: #{tpu_custom_call.1} parent=1 // pred_region
      %s81 = ssub.s32 16, 16
      %82 = vsyncadd [#allocation5], %s81
      %85 = dma.smem_to_hbm [#allocation6], 16, %s2, [#allocation5]
    $region25: #{tpu_custom_call.1} parent=1 // pred_fallthru
      _
    // Predicated region
    $region26: #{tpu_custom_call.1} parent=1 // pred_check
      _
    $region27: #{tpu_custom_call.1} parent=1 // pred_check_branch
      %87 = sbr.rel (0) target = $region29
    $region28: #{tpu_custom_call.1} parent=1 // pred_region
      %88 = dma.done [#allocation5], 16
    $region29: #{tpu_custom_call.1} parent=1 // pred_fallthru
      _
    %89 = sfence
    %90 = vsyncpa [#allocation4], 1
    %91 = vsyncpa [#allocation5], 1

</llo_original>
